<compile_context>
chip_gen: v5e
topology: v5e:2x2
jax: 0.10.0
libtpu: 0.0.40
codegen_flags: <defaults>
</compile_context>

<pallas_src>
import functools

import jax
import jax.numpy as jnp
from jax.experimental import pallas as pl
from jax.experimental.pallas import tpu as pltpu


def gru_kernel(x_ref, wih_ref, whh_ref, bgi_ref, bhn_ref, w2_ref, b2_ref,
               out_ref, *, T, B, H):
    # ---- hoisted input projection for ALL timesteps (one MXU push, not T) ----
    # gi_all[t*B + b, :] = x[t, b, :] @ W_ih^T + [b_ir+b_hr | b_iz+b_hz | b_in]
    # Kept as a value: at (T*B, 3H) f32 it is ~8 vregs, well under the 64-vreg
    # budget, so no VMEM round-trip touches the serial recurrence chain.
    gi_all = (
        jnp.dot(x_ref[...], wih_ref[...], preferred_element_type=jnp.float32)
        + bgi_ref[...]
    )

    whh = whh_ref[...]                                   # (H, 3H), loop-invariant
    # hoisted broadcast of the n-gate hidden bias b_hn (gated by r in the loop)
    bhn = jnp.broadcast_to(bhn_ref[...], (B, H))         # (B, H)

    # ---- serial GRU recurrence, h carried in registers ----
    # Static unrolled loop -> constant sublane-aligned slices of gi_all and
    # full scheduler visibility to pipeline step t's MXU push under step t-1's
    # gate math.  T is small, so live-range growth is a non-issue.
    h = jnp.zeros((B, H), jnp.float32)
    for t in range(T):
        gi = gi_all[t * B:(t + 1) * B, :]                # (B, 3H) static slice
        gh = jnp.dot(h, whh, preferred_element_type=jnp.float32)   # (B, 3H)
        a = gi + gh                                      # shared pre-activation
        rz = jax.nn.sigmoid(a[:, :2 * H])                # one EUP call for r and z
        r = rz[:, :H]
        z = rz[:, H:]
        n = jnp.tanh(gi[:, 2 * H:] + r * (gh[:, 2 * H:] + bhn))
        h = (1.0 - z) * n + z * h

    # ---- final Linear + L2 normalize (F.normalize, p=2, dim=1, eps=1e-12) ----
    out = jnp.dot(h, w2_ref[...], preferred_element_type=jnp.float32) + b2_ref[...]
    sumsq = jnp.sum(out * out, axis=1, keepdims=True)
    # exact rsqrt (single EUP op); max(sumsq, 1e-24) matches eps=1e-12 on the norm
    out_ref[...] = out * jax.lax.rsqrt(jnp.maximum(sumsq, 1e-24))


def gru_single_layer(x, w_ih, w_hh, b_ih, b_hh, w2, b2):
    """x: (B, T, I) batch-first (like the PyTorch module). Returns (B, O).

    For throughput, stack independent sequences into the batch dimension and
    call once: the per-step (B,H)x(H,3H) matmul stays a single MXU pass up to
    B~128 (v5e) / ~256 (v6e/v7x), so extra rows are nearly free.
    """
    B, T, I = x.shape
    H = w_hh.shape[1]
    O = w2.shape[0]

    # Pad batch to the native 8-sublane tile so vregs/MXU LHS are fully used.
    Bp = ((B + 7) // 8) * 8
    x_f = jnp.asarray(x, jnp.float32)
    if Bp != B:
        x_f = jnp.pad(x_f, ((0, Bp - B), (0, 0), (0, 0)))

    # time-major and flattened over (T, B) so one matmul projects all steps
    x_tm = jnp.transpose(x_f, (1, 0, 2)).reshape(T * Bp, I)      # (T*Bp, I)

    wih_t = jnp.asarray(w_ih, jnp.float32).T                      # (I, 3H)
    whh_t = jnp.asarray(w_hh, jnp.float32).T                      # (H, 3H)
    w2_t = jnp.asarray(w2, jnp.float32).T                         # (H, O)

    b_ih_f = jnp.asarray(b_ih, jnp.float32)
    b_hh_f = jnp.asarray(b_hh, jnp.float32)
    # Fold hidden biases of the r/z gates into the input-projection bias; the
    # n-gate hidden bias must stay with gh because it is multiplied by r.
    b_gi = jnp.concatenate(
        [b_ih_f[:2 * H] + b_hh_f[:2 * H], b_ih_f[2 * H:]]).reshape(1, 3 * H)
    b_hn = b_hh_f[2 * H:].reshape(1, H)                           # n-gate only
    b2_2 = jnp.asarray(b2, jnp.float32).reshape(1, O)

    kernel = functools.partial(gru_kernel, T=T, B=Bp, H=H)

    # Single gridless invocation: all operands fit trivially in VMEM.  No
    # scratch needed — the projection stays register-resident in the kernel.
    out = pl.pallas_call(
        kernel,
        out_shape=jax.ShapeDtypeStruct((Bp, O), jnp.float32),
    )(x_tm, wih_t, whh_t, b_gi, b_hn, w2_t, b2_2)

    return out[:B]


def gru_reference(x, w_ih, w_hh, b_ih, b_hh, w2, b2):
    """Pure-JAX reference of the PyTorch forward (eval mode, num_layers=1)."""
    B, T, I = x.shape
    H = w_hh.shape[1]
    h = jnp.zeros((B, H), jnp.float32)
    for t in range(T):
        x_t = x[:, t, :]
        gi = x_t @ w_ih.T + b_ih
        gh = h @ w_hh.T + b_hh
        r = jax.nn.sigmoid(gi[:, :H] + gh[:, :H])
        z = jax.nn.sigmoid(gi[:, H:2 * H] + gh[:, H:2 * H])
        n = jnp.tanh(gi[:, 2 * H:] + r * gh[:, 2 * H:])
        h = (1.0 - z) * n + z * h
    out = h @ w2.T + b2
    norm = jnp.sqrt(jnp.sum(out * out, axis=1, keepdims=True))
    return out / jnp.maximum(norm, 1e-12)


if __name__ == "__main__":
    # Module config: GRUsinglelayer(input_size=16, hidden_size=32, output_size=8,
    # num_layers=1). Dropout only acts between stacked GRU layers -> no-op here.
    B, T, I, H, O = 2, 8, 16, 32, 8

    key = jax.random.PRNGKey(0)
    kx, k1, k2, k3, k4, k5, k6 = jax.random.split(key, 7)
    bound = 1.0 / jnp.sqrt(H)

    x = jax.random.normal(kx, (B, T, I), jnp.float32)
    w_ih = jax.random.uniform(k1, (3 * H, I), jnp.float32, -bound, bound)
    w_hh = jax.random.uniform(k2, (3 * H, H), jnp.float32, -bound, bound)
    b_ih = jax.random.uniform(k3, (3 * H,), jnp.float32, -bound, bound)
    b_hh = jax.random.uniform(k4, (3 * H,), jnp.float32, -bound, bound)
    w2 = jax.random.uniform(k5, (O, H), jnp.float32, -bound, bound)
    b2 = jax.random.uniform(k6, (O,), jnp.float32, -bound, bound)

    out = gru_single_layer(x, w_ih, w_hh, b_ih, b_hh, w2, b2)
    out = jax.block_until_ready(out)

    ref = gru_reference(x, w_ih, w_hh, b_ih, b_hh, w2, b2)
    assert out.shape == (B, O)
    assert jnp.allclose(out, ref, atol=1e-5, rtol=1e-5), "mismatch vs reference"

    print("KERNEL_OK")
</pallas_src>

<mosaic_0001>
module attributes {stable_mosaic.version = 11 : i64} {
  func.func @gru_kernel(%arg0: memref<64x16xf32, #tpu.memory_space<vmem>>, %arg1: memref<16x96xf32, #tpu.memory_space<vmem>>, %arg2: memref<32x96xf32, #tpu.memory_space<vmem>>, %arg3: memref<1x96xf32, #tpu.memory_space<vmem>>, %arg4: memref<1x32xf32, #tpu.memory_space<vmem>>, %arg5: memref<32x8xf32, #tpu.memory_space<vmem>>, %arg6: memref<1x8xf32, #tpu.memory_space<vmem>>, %arg7: memref<8x8xf32, #tpu.memory_space<vmem>>) attributes {dimension_semantics = [], scalar_prefetch = 0 : i64, scratch_operands = 0 : i64, tpu.core_type = #tpu.core_type<tc>} {
    %c0 = arith.constant 0 : index
    %c0_0 = arith.constant 0 : index
    %0 = vector.load %arg0[%c0, %c0_0] : memref<64x16xf32, #tpu.memory_space<vmem>>, vector<64x16xf32>
    %c0_1 = arith.constant 0 : index
    %c0_2 = arith.constant 0 : index
    %1 = vector.load %arg1[%c0_1, %c0_2] : memref<16x96xf32, #tpu.memory_space<vmem>>, vector<16x96xf32>
    %cst = arith.constant dense<0.000000e+00> : vector<64x96xf32>
    %2 = tpu.matmul %0, %1, %cst {dimension_numbers = #tpu.dot_dimension_numbers<[1], [0], [0], [1], [0, 0, 1, 1], [], []>} : vector<64x16xf32>, vector<16x96xf32>, vector<64x96xf32> -> vector<64x96xf32>
    %c0_3 = arith.constant 0 : index
    %c0_4 = arith.constant 0 : index
    %3 = vector.load %arg3[%c0_3, %c0_4] : memref<1x96xf32, #tpu.memory_space<vmem>>, vector<1x96xf32>
    %4 = vector.broadcast %3 : vector<1x96xf32> to vector<64x96xf32>
    %5 = arith.addf %2, %4 : vector<64x96xf32>
    %c0_5 = arith.constant 0 : index
    %c0_6 = arith.constant 0 : index
    %6 = vector.load %arg2[%c0_5, %c0_6] : memref<32x96xf32, #tpu.memory_space<vmem>>, vector<32x96xf32>
    %c0_7 = arith.constant 0 : index
    %c0_8 = arith.constant 0 : index
    %7 = vector.load %arg4[%c0_7, %c0_8] : memref<1x32xf32, #tpu.memory_space<vmem>>, vector<1x32xf32>
    %8 = vector.shape_cast %7 : vector<1x32xf32> to vector<1x32xf32>
    %9 = vector.broadcast %8 : vector<1x32xf32> to vector<8x32xf32>
    %cst_9 = arith.constant 0.000000e+00 : f32
    %10 = vector.broadcast %cst_9 : f32 to vector<8x32xf32>
    %11 = vector.extract_strided_slice %5 {offsets = [0, 0], sizes = [8, 96], strides = [1, 1]} : vector<64x96xf32> to vector<8x96xf32>
    %cst_10 = arith.constant dense<0.000000e+00> : vector<8x96xf32>
    %12 = tpu.matmul %10, %6, %cst_10 {dimension_numbers = #tpu.dot_dimension_numbers<[1], [0], [0], [1], [0, 0, 1, 1], [], []>} : vector<8x32xf32>, vector<32x96xf32>, vector<8x96xf32> -> vector<8x96xf32>
    %13 = arith.addf %11, %12 : vector<8x96xf32>
    %14 = vector.extract_strided_slice %13 {offsets = [0, 0], sizes = [8, 64], strides = [1, 1]} : vector<8x96xf32> to vector<8x64xf32>
    %15 = arith.negf %14 : vector<8x64xf32>
    %16 = math.exp %15 : vector<8x64xf32>
    %cst_11 = arith.constant 1.000000e+00 : f32
    %17 = vector.broadcast %cst_11 : f32 to vector<8x64xf32>
    %18 = arith.addf %17, %16 : vector<8x64xf32>
    %19 = arith.divf %17, %18 : vector<8x64xf32>
    %20 = vector.extract_strided_slice %19 {offsets = [0, 0], sizes = [8, 32], strides = [1, 1]} : vector<8x64xf32> to vector<8x32xf32>
    %21 = vector.extract_strided_slice %19 {offsets = [0, 32], sizes = [8, 32], strides = [1, 1]} : vector<8x64xf32> to vector<8x32xf32>
    %22 = vector.extract_strided_slice %11 {offsets = [0, 64], sizes = [8, 32], strides = [1, 1]} : vector<8x96xf32> to vector<8x32xf32>
    %23 = vector.extract_strided_slice %12 {offsets = [0, 64], sizes = [8, 32], strides = [1, 1]} : vector<8x96xf32> to vector<8x32xf32>
    %24 = arith.addf %23, %9 : vector<8x32xf32>
    %25 = arith.mulf %20, %24 : vector<8x32xf32>
    %26 = arith.addf %22, %25 : vector<8x32xf32>
    %27 = math.tanh %26 : vector<8x32xf32>
    %cst_12 = arith.constant 1.000000e+00 : f32
    %28 = vector.broadcast %cst_12 : f32 to vector<8x32xf32>
    %29 = arith.subf %28, %21 : vector<8x32xf32>
    %30 = arith.mulf %29, %27 : vector<8x32xf32>
    %31 = arith.mulf %21, %10 : vector<8x32xf32>
    %32 = arith.addf %30, %31 : vector<8x32xf32>
    %33 = vector.extract_strided_slice %5 {offsets = [8, 0], sizes = [8, 96], strides = [1, 1]} : vector<64x96xf32> to vector<8x96xf32>
    %cst_13 = arith.constant dense<0.000000e+00> : vector<8x96xf32>
    %34 = tpu.matmul %32, %6, %cst_13 {dimension_numbers = #tpu.dot_dimension_numbers<[1], [0], [0], [1], [0, 0, 1, 1], [], []>} : vector<8x32xf32>, vector<32x96xf32>, vector<8x96xf32> -> vector<8x96xf32>
    %35 = arith.addf %33, %34 : vector<8x96xf32>
    %36 = vector.extract_strided_slice %35 {offsets = [0, 0], sizes = [8, 64], strides = [1, 1]} : vector<8x96xf32> to vector<8x64xf32>
    %37 = arith.negf %36 : vector<8x64xf32>
    %38 = math.exp %37 : vector<8x64xf32>
    %cst_14 = arith.constant 1.000000e+00 : f32
    %39 = vector.broadcast %cst_14 : f32 to vector<8x64xf32>
    %40 = arith.addf %39, %38 : vector<8x64xf32>
    %41 = arith.divf %39, %40 : vector<8x64xf32>
    %42 = vector.extract_strided_slice %41 {offsets = [0, 0], sizes = [8, 32], strides = [1, 1]} : vector<8x64xf32> to vector<8x32xf32>
    %43 = vector.extract_strided_slice %41 {offsets = [0, 32], sizes = [8, 32], strides = [1, 1]} : vector<8x64xf32> to vector<8x32xf32>
    %44 = vector.extract_strided_slice %33 {offsets = [0, 64], sizes = [8, 32], strides = [1, 1]} : vector<8x96xf32> to vector<8x32xf32>
    %45 = vector.extract_strided_slice %34 {offsets = [0, 64], sizes = [8, 32], strides = [1, 1]} : vector<8x96xf32> to vector<8x32xf32>
    %46 = arith.addf %45, %9 : vector<8x32xf32>
    %47 = arith.mulf %42, %46 : vector<8x32xf32>
    %48 = arith.addf %44, %47 : vector<8x32xf32>
    %49 = math.tanh %48 : vector<8x32xf32>
    %cst_15 = arith.constant 1.000000e+00 : f32
    %50 = vector.broadcast %cst_15 : f32 to vector<8x32xf32>
    %51 = arith.subf %50, %43 : vector<8x32xf32>
    %52 = arith.mulf %51, %49 : vector<8x32xf32>
    %53 = arith.mulf %43, %32 : vector<8x32xf32>
    %54 = arith.addf %52, %53 : vector<8x32xf32>
    %55 = vector.extract_strided_slice %5 {offsets = [16, 0], sizes = [8, 96], strides = [1, 1]} : vector<64x96xf32> to vector<8x96xf32>
    %cst_16 = arith.constant dense<0.000000e+00> : vector<8x96xf32>
    %56 = tpu.matmul %54, %6, %cst_16 {dimension_numbers = #tpu.dot_dimension_numbers<[1], [0], [0], [1], [0, 0, 1, 1], [], []>} : vector<8x32xf32>, vector<32x96xf32>, vector<8x96xf32> -> vector<8x96xf32>
    %57 = arith.addf %55, %56 : vector<8x96xf32>
    %58 = vector.extract_strided_slice %57 {offsets = [0, 0], sizes = [8, 64], strides = [1, 1]} : vector<8x96xf32> to vector<8x64xf32>
    %59 = arith.negf %58 : vector<8x64xf32>
    %60 = math.exp %59 : vector<8x64xf32>
    %cst_17 = arith.constant 1.000000e+00 : f32
    %61 = vector.broadcast %cst_17 : f32 to vector<8x64xf32>
    %62 = arith.addf %61, %60 : vector<8x64xf32>
    %63 = arith.divf %61, %62 : vector<8x64xf32>
    %64 = vector.extract_strided_slice %63 {offsets = [0, 0], sizes = [8, 32], strides = [1, 1]} : vector<8x64xf32> to vector<8x32xf32>
    %65 = vector.extract_strided_slice %63 {offsets = [0, 32], sizes = [8, 32], strides = [1, 1]} : vector<8x64xf32> to vector<8x32xf32>
    %66 = vector.extract_strided_slice %55 {offsets = [0, 64], sizes = [8, 32], strides = [1, 1]} : vector<8x96xf32> to vector<8x32xf32>
    %67 = vector.extract_strided_slice %56 {offsets = [0, 64], sizes = [8, 32], strides = [1, 1]} : vector<8x96xf32> to vector<8x32xf32>
    %68 = arith.addf %67, %9 : vector<8x32xf32>
    %69 = arith.mulf %64, %68 : vector<8x32xf32>
    %70 = arith.addf %66, %69 : vector<8x32xf32>
    %71 = math.tanh %70 : vector<8x32xf32>
    %cst_18 = arith.constant 1.000000e+00 : f32
    %72 = vector.broadcast %cst_18 : f32 to vector<8x32xf32>
    %73 = arith.subf %72, %65 : vector<8x32xf32>
    %74 = arith.mulf %73, %71 : vector<8x32xf32>
    %75 = arith.mulf %65, %54 : vector<8x32xf32>
    %76 = arith.addf %74, %75 : vector<8x32xf32>
    %77 = vector.extract_strided_slice %5 {offsets = [24, 0], sizes = [8, 96], strides = [1, 1]} : vector<64x96xf32> to vector<8x96xf32>
    %cst_19 = arith.constant dense<0.000000e+00> : vector<8x96xf32>
    %78 = tpu.matmul %76, %6, %cst_19 {dimension_numbers = #tpu.dot_dimension_numbers<[1], [0], [0], [1], [0, 0, 1, 1], [], []>} : vector<8x32xf32>, vector<32x96xf32>, vector<8x96xf32> -> vector<8x96xf32>
    %79 = arith.addf %77, %78 : vector<8x96xf32>
    %80 = vector.extract_strided_slice %79 {offsets = [0, 0], sizes = [8, 64], strides = [1, 1]} : vector<8x96xf32> to vector<8x64xf32>
    %81 = arith.negf %80 : vector<8x64xf32>
    %82 = math.exp %81 : vector<8x64xf32>
    %cst_20 = arith.constant 1.000000e+00 : f32
    %83 = vector.broadcast %cst_20 : f32 to vector<8x64xf32>
    %84 = arith.addf %83, %82 : vector<8x64xf32>
    %85 = arith.divf %83, %84 : vector<8x64xf32>
    %86 = vector.extract_strided_slice %85 {offsets = [0, 0], sizes = [8, 32], strides = [1, 1]} : vector<8x64xf32> to vector<8x32xf32>
    %87 = vector.extract_strided_slice %85 {offsets = [0, 32], sizes = [8, 32], strides = [1, 1]} : vector<8x64xf32> to vector<8x32xf32>
    %88 = vector.extract_strided_slice %77 {offsets = [0, 64], sizes = [8, 32], strides = [1, 1]} : vector<8x96xf32> to vector<8x32xf32>
    %89 = vector.extract_strided_slice %78 {offsets = [0, 64], sizes = [8, 32], strides = [1, 1]} : vector<8x96xf32> to vector<8x32xf32>
    %90 = arith.addf %89, %9 : vector<8x32xf32>
    %91 = arith.mulf %86, %90 : vector<8x32xf32>
    %92 = arith.addf %88, %91 : vector<8x32xf32>
    %93 = math.tanh %92 : vector<8x32xf32>
    %cst_21 = arith.constant 1.000000e+00 : f32
    %94 = vector.broadcast %cst_21 : f32 to vector<8x32xf32>
    %95 = arith.subf %94, %87 : vector<8x32xf32>
    %96 = arith.mulf %95, %93 : vector<8x32xf32>
    %97 = arith.mulf %87, %76 : vector<8x32xf32>
    %98 = arith.addf %96, %97 : vector<8x32xf32>
    %99 = vector.extract_strided_slice %5 {offsets = [32, 0], sizes = [8, 96], strides = [1, 1]} : vector<64x96xf32> to vector<8x96xf32>
    %cst_22 = arith.constant dense<0.000000e+00> : vector<8x96xf32>
    %100 = tpu.matmul %98, %6, %cst_22 {dimension_numbers = #tpu.dot_dimension_numbers<[1], [0], [0], [1], [0, 0, 1, 1], [], []>} : vector<8x32xf32>, vector<32x96xf32>, vector<8x96xf32> -> vector<8x96xf32>
    %101 = arith.addf %99, %100 : vector<8x96xf32>
    %102 = vector.extract_strided_slice %101 {offsets = [0, 0], sizes = [8, 64], strides = [1, 1]} : vector<8x96xf32> to vector<8x64xf32>
    %103 = arith.negf %102 : vector<8x64xf32>
    %104 = math.exp %103 : vector<8x64xf32>
    %cst_23 = arith.constant 1.000000e+00 : f32
    %105 = vector.broadcast %cst_23 : f32 to vector<8x64xf32>
    %106 = arith.addf %105, %104 : vector<8x64xf32>
    %107 = arith.divf %105, %106 : vector<8x64xf32>
    %108 = vector.extract_strided_slice %107 {offsets = [0, 0], sizes = [8, 32], strides = [1, 1]} : vector<8x64xf32> to vector<8x32xf32>
    %109 = vector.extract_strided_slice %107 {offsets = [0, 32], sizes = [8, 32], strides = [1, 1]} : vector<8x64xf32> to vector<8x32xf32>
    %110 = vector.extract_strided_slice %99 {offsets = [0, 64], sizes = [8, 32], strides = [1, 1]} : vector<8x96xf32> to vector<8x32xf32>
    %111 = vector.extract_strided_slice %100 {offsets = [0, 64], sizes = [8, 32], strides = [1, 1]} : vector<8x96xf32> to vector<8x32xf32>
    %112 = arith.addf %111, %9 : vector<8x32xf32>
    %113 = arith.mulf %108, %112 : vector<8x32xf32>
    %114 = arith.addf %110, %113 : vector<8x32xf32>
    %115 = math.tanh %114 : vector<8x32xf32>
    %cst_24 = arith.constant 1.000000e+00 : f32
    %116 = vector.broadcast %cst_24 : f32 to vector<8x32xf32>
    %117 = arith.subf %116, %109 : vector<8x32xf32>
    %118 = arith.mulf %117, %115 : vector<8x32xf32>
    %119 = arith.mulf %109, %98 : vector<8x32xf32>
    %120 = arith.addf %118, %119 : vector<8x32xf32>
    %121 = vector.extract_strided_slice %5 {offsets = [40, 0], sizes = [8, 96], strides = [1, 1]} : vector<64x96xf32> to vector<8x96xf32>
    %cst_25 = arith.constant dense<0.000000e+00> : vector<8x96xf32>
    %122 = tpu.matmul %120, %6, %cst_25 {dimension_numbers = #tpu.dot_dimension_numbers<[1], [0], [0], [1], [0, 0, 1, 1], [], []>} : vector<8x32xf32>, vector<32x96xf32>, vector<8x96xf32> -> vector<8x96xf32>
    %123 = arith.addf %121, %122 : vector<8x96xf32>
    %124 = vector.extract_strided_slice %123 {offsets = [0, 0], sizes = [8, 64], strides = [1, 1]} : vector<8x96xf32> to vector<8x64xf32>
    %125 = arith.negf %124 : vector<8x64xf32>
    %126 = math.exp %125 : vector<8x64xf32>
    %cst_26 = arith.constant 1.000000e+00 : f32
    %127 = vector.broadcast %cst_26 : f32 to vector<8x64xf32>
    %128 = arith.addf %127, %126 : vector<8x64xf32>
    %129 = arith.divf %127, %128 : vector<8x64xf32>
    %130 = vector.extract_strided_slice %129 {offsets = [0, 0], sizes = [8, 32], strides = [1, 1]} : vector<8x64xf32> to vector<8x32xf32>
    %131 = vector.extract_strided_slice %129 {offsets = [0, 32], sizes = [8, 32], strides = [1, 1]} : vector<8x64xf32> to vector<8x32xf32>
    %132 = vector.extract_strided_slice %121 {offsets = [0, 64], sizes = [8, 32], strides = [1, 1]} : vector<8x96xf32> to vector<8x32xf32>
    %133 = vector.extract_strided_slice %122 {offsets = [0, 64], sizes = [8, 32], strides = [1, 1]} : vector<8x96xf32> to vector<8x32xf32>
    %134 = arith.addf %133, %9 : vector<8x32xf32>
    %135 = arith.mulf %130, %134 : vector<8x32xf32>
    %136 = arith.addf %132, %135 : vector<8x32xf32>
    %137 = math.tanh %136 : vector<8x32xf32>
    %cst_27 = arith.constant 1.000000e+00 : f32
    %138 = vector.broadcast %cst_27 : f32 to vector<8x32xf32>
    %139 = arith.subf %138, %131 : vector<8x32xf32>
    %140 = arith.mulf %139, %137 : vector<8x32xf32>
    %141 = arith.mulf %131, %120 : vector<8x32xf32>
    %142 = arith.addf %140, %141 : vector<8x32xf32>
    %143 = vector.extract_strided_slice %5 {offsets = [48, 0], sizes = [8, 96], strides = [1, 1]} : vector<64x96xf32> to vector<8x96xf32>
    %cst_28 = arith.constant dense<0.000000e+00> : vector<8x96xf32>
    %144 = tpu.matmul %142, %6, %cst_28 {dimension_numbers = #tpu.dot_dimension_numbers<[1], [0], [0], [1], [0, 0, 1, 1], [], []>} : vector<8x32xf32>, vector<32x96xf32>, vector<8x96xf32> -> vector<8x96xf32>
    %145 = arith.addf %143, %144 : vector<8x96xf32>
    %146 = vector.extract_strided_slice %145 {offsets = [0, 0], sizes = [8, 64], strides = [1, 1]} : vector<8x96xf32> to vector<8x64xf32>
    %147 = arith.negf %146 : vector<8x64xf32>
    %148 = math.exp %147 : vector<8x64xf32>
    %cst_29 = arith.constant 1.000000e+00 : f32
    %149 = vector.broadcast %cst_29 : f32 to vector<8x64xf32>
    %150 = arith.addf %149, %148 : vector<8x64xf32>
    %151 = arith.divf %149, %150 : vector<8x64xf32>
    %152 = vector.extract_strided_slice %151 {offsets = [0, 0], sizes = [8, 32], strides = [1, 1]} : vector<8x64xf32> to vector<8x32xf32>
    %153 = vector.extract_strided_slice %151 {offsets = [0, 32], sizes = [8, 32], strides = [1, 1]} : vector<8x64xf32> to vector<8x32xf32>
    %154 = vector.extract_strided_slice %143 {offsets = [0, 64], sizes = [8, 32], strides = [1, 1]} : vector<8x96xf32> to vector<8x32xf32>
    %155 = vector.extract_strided_slice %144 {offsets = [0, 64], sizes = [8, 32], strides = [1, 1]} : vector<8x96xf32> to vector<8x32xf32>
    %156 = arith.addf %155, %9 : vector<8x32xf32>
    %157 = arith.mulf %152, %156 : vector<8x32xf32>
    %158 = arith.addf %154, %157 : vector<8x32xf32>
    %159 = math.tanh %158 : vector<8x32xf32>
    %cst_30 = arith.constant 1.000000e+00 : f32
    %160 = vector.broadcast %cst_30 : f32 to vector<8x32xf32>
    %161 = arith.subf %160, %153 : vector<8x32xf32>
    %162 = arith.mulf %161, %159 : vector<8x32xf32>
    %163 = arith.mulf %153, %142 : vector<8x32xf32>
    %164 = arith.addf %162, %163 : vector<8x32xf32>
    %165 = vector.extract_strided_slice %5 {offsets = [56, 0], sizes = [8, 96], strides = [1, 1]} : vector<64x96xf32> to vector<8x96xf32>
    %cst_31 = arith.constant dense<0.000000e+00> : vector<8x96xf32>
    %166 = tpu.matmul %164, %6, %cst_31 {dimension_numbers = #tpu.dot_dimension_numbers<[1], [0], [0], [1], [0, 0, 1, 1], [], []>} : vector<8x32xf32>, vector<32x96xf32>, vector<8x96xf32> -> vector<8x96xf32>
    %167 = arith.addf %165, %166 : vector<8x96xf32>
    %168 = vector.extract_strided_slice %167 {offsets = [0, 0], sizes = [8, 64], strides = [1, 1]} : vector<8x96xf32> to vector<8x64xf32>
    %169 = arith.negf %168 : vector<8x64xf32>
    %170 = math.exp %169 : vector<8x64xf32>
    %cst_32 = arith.constant 1.000000e+00 : f32
    %171 = vector.broadcast %cst_32 : f32 to vector<8x64xf32>
    %172 = arith.addf %171, %170 : vector<8x64xf32>
    %173 = arith.divf %171, %172 : vector<8x64xf32>
    %174 = vector.extract_strided_slice %173 {offsets = [0, 0], sizes = [8, 32], strides = [1, 1]} : vector<8x64xf32> to vector<8x32xf32>
    %175 = vector.extract_strided_slice %173 {offsets = [0, 32], sizes = [8, 32], strides = [1, 1]} : vector<8x64xf32> to vector<8x32xf32>
    %176 = vector.extract_strided_slice %165 {offsets = [0, 64], sizes = [8, 32], strides = [1, 1]} : vector<8x96xf32> to vector<8x32xf32>
    %177 = vector.extract_strided_slice %166 {offsets = [0, 64], sizes = [8, 32], strides = [1, 1]} : vector<8x96xf32> to vector<8x32xf32>
    %178 = arith.addf %177, %9 : vector<8x32xf32>
    %179 = arith.mulf %174, %178 : vector<8x32xf32>
    %180 = arith.addf %176, %179 : vector<8x32xf32>
    %181 = math.tanh %180 : vector<8x32xf32>
    %cst_33 = arith.constant 1.000000e+00 : f32
    %182 = vector.broadcast %cst_33 : f32 to vector<8x32xf32>
    %183 = arith.subf %182, %175 : vector<8x32xf32>
    %184 = arith.mulf %183, %181 : vector<8x32xf32>
    %185 = arith.mulf %175, %164 : vector<8x32xf32>
    %186 = arith.addf %184, %185 : vector<8x32xf32>
    %c0_34 = arith.constant 0 : index
    %c0_35 = arith.constant 0 : index
    %187 = vector.load %arg5[%c0_34, %c0_35] : memref<32x8xf32, #tpu.memory_space<vmem>>, vector<32x8xf32>
    %cst_36 = arith.constant dense<0.000000e+00> : vector<8x8xf32>
    %188 = tpu.matmul %186, %187, %cst_36 {dimension_numbers = #tpu.dot_dimension_numbers<[1], [0], [0], [1], [0, 0, 1, 1], [], []>} : vector<8x32xf32>, vector<32x8xf32>, vector<8x8xf32> -> vector<8x8xf32>
    %c0_37 = arith.constant 0 : index
    %c0_38 = arith.constant 0 : index
    %189 = vector.load %arg6[%c0_37, %c0_38] : memref<1x8xf32, #tpu.memory_space<vmem>>, vector<1x8xf32>
    %190 = vector.broadcast %189 : vector<1x8xf32> to vector<8x8xf32>
    %191 = arith.addf %188, %190 : vector<8x8xf32>
    %192 = arith.mulf %191, %191 : vector<8x8xf32>
    %cst_39 = arith.constant dense<0.000000e+00> : vector<8xf32>
    %193 = vector.multi_reduction <add>, %192, %cst_39 [1] : vector<8x8xf32> to vector<8xf32>
    %194 = vector.shape_cast %193 : vector<8xf32> to vector<8x1xf32>
    %cst_40 = arith.constant 1.000000e-24 : f32
    %195 = vector.broadcast %cst_40 : f32 to vector<8x1xf32>
    %196 = arith.maximumf %194, %195 : vector<8x1xf32>
    %197 = math.rsqrt %196 : vector<8x1xf32>
    %198 = vector.broadcast %197 : vector<8x1xf32> to vector<8x8xf32>
    %199 = arith.mulf %191, %198 : vector<8x8xf32>
    %c0_41 = arith.constant 0 : index
    %c0_42 = arith.constant 0 : index
    %200 = vector.load %arg7[%c0_41, %c0_42] : memref<8x8xf32, #tpu.memory_space<vmem>>, vector<8x8xf32>
    tpu.vector_store %arg7[%c0_41, %c0_42], %199 {strides = array<i32>} : memref<8x8xf32, #tpu.memory_space<vmem>>, vector<8x8xf32>,
    return
  }
}

</mosaic_0001>

<llo_original>
// kernel: tpu_custom_call.1
$region0: #{tpu_custom_call.1}
  #allocation0 [shape = 'u32[]', space=smem, size = 0x4, offset = 0x4, fixed_abs, tag = 'smem constant byte address 0x4 - core index']
  #allocation1 [shape = 'u32[72,128]{1,0:T(1,128)}', space=vmem, size = 0x9000, scoped, tag = 'internal scratch']
  %s0 = inlined_call_operand.vmem [shape: f32[64,16], index: 0, kind: input, shape index: {}]
  %s1 = inlined_call_operand.vmem [shape: f32[16,96], index: 1, kind: input, shape index: {}]
  %s2 = inlined_call_operand.vmem [shape: f32[32,96], index: 2, kind: input, shape index: {}]
  %s3 = inlined_call_operand.vmem [shape: f32[1,96], index: 3, kind: input, shape index: {}]
  %s4 = inlined_call_operand.vmem [shape: f32[1,32], index: 4, kind: input, shape index: {}]
  %s5 = inlined_call_operand.vmem [shape: f32[32,8], index: 5, kind: input, shape index: {}]
  %s6 = inlined_call_operand.vmem [shape: f32[1,8], index: 6, kind: input, shape index: {}]
  %s7 = inlined_call_operand.hbm [shape: f32[8,8], index: 7, kind: output, shape index: {}]
  %s8 = sld [smem:[#allocation0]]
  $region38: #{tpu_custom_call.1} parent=0
    _
  %s10 = ssub.s32 1, %s8
  %s11 = scalar_select 0, %s10, %s8
  $region1: #{tpu_custom_call.1} parent=0
    #allocation2 [shape = 'u8[4096]{0}', space=vmem, size = 0x1000, scoped, tag = 'output window, operand 0, single buffered']
    #allocation3 [shape = 's32[1]{0}', space=sflag, size = 0x4, scoped, tag = 'scoped memory for tpu_custom_call.1']
    %12 = vsyncpa [#allocation3], 0
    // Predicated region
    $region2: #{tpu_custom_call.1} parent=1 // pred_check
      _
    $region3: #{tpu_custom_call.1} parent=1 // pred_check_branch
      %14 = sbr.rel (0) target = $region5
    $region4: #{tpu_custom_call.1} parent=1 // pred_region
      _
    $region5: #{tpu_custom_call.1} parent=1 // pred_fallthru
      _
    // Predicated region
    $region6: #{tpu_custom_call.1} parent=1 // pred_check
      _
    $region7: #{tpu_custom_call.1} parent=1 // pred_check_branch
      %16 = sbr.rel (0) target = $region9
    $region8: #{tpu_custom_call.1} parent=1 // pred_region
      _
    $region9: #{tpu_custom_call.1} parent=1 // pred_fallthru
      _
    // Predicated region
    $region10: #{tpu_custom_call.1} parent=1 // pred_check
      _
    $region11: #{tpu_custom_call.1} parent=1 // pred_check_branch
      %18 = sbr.rel (0) target = $region13
    $region12: #{tpu_custom_call.1} parent=1 // pred_region
      _
    $region13: #{tpu_custom_call.1} parent=1 // pred_fallthru
      _
    // Predicated region
    $region14: #{tpu_custom_call.1} parent=1 // pred_check
      _
    $region15: #{tpu_custom_call.1} parent=1 // pred_check_branch
      %20 = sbr.rel (0) target = $region17
    $region16: #{tpu_custom_call.1} parent=1 // pred_region
      _
    $region17: #{tpu_custom_call.1} parent=1 // pred_fallthru
      _
    // Predicated region
    $region18: #{tpu_custom_call.1} parent=1 // pred_check
      _
    $region19: #{tpu_custom_call.1} parent=1 // pred_check_branch
      %22 = sbr.rel (0) target = $region21
    $region20: #{tpu_custom_call.1} parent=1 // pred_region
      _
    $region21: #{tpu_custom_call.1} parent=1 // pred_fallthru
      _
    // Predicated region
    $region22: #{tpu_custom_call.1} parent=1 // pred_check
      _
    $region23: #{tpu_custom_call.1} parent=1 // pred_check_branch
      %24 = sbr.rel (0) target = $region25
    $region24: #{tpu_custom_call.1} parent=1 // pred_region
      _
    $region25: #{tpu_custom_call.1} parent=1 // pred_fallthru
      _
    // Predicated region
    $region26: #{tpu_custom_call.1} parent=1 // pred_check
      _
    $region27: #{tpu_custom_call.1} parent=1 // pred_check_branch
      %26 = sbr.rel (0) target = $region29
    $region28: #{tpu_custom_call.1} parent=1 // pred_region
      _
    $region29: #{tpu_custom_call.1} parent=1 // pred_fallthru
      _
    %v27 = vld [vmem:[%s0] sm:$0xff]
    %v28 = vld [vmem:[%s0 + $0x8] sm:$0xff]
    %v29 = vld [vmem:[%s0 + $0x10] sm:$0xff]
    %v30 = vld [vmem:[%s0 + $0x18] sm:$0xff]
    %v31 = vld [vmem:[%s0 + $0x20] sm:$0xff]
    %v32 = vld [vmem:[%s0 + $0x28] sm:$0xff]
    %v33 = vld [vmem:[%s0 + $0x30] sm:$0xff]
    %v34 = vld [vmem:[%s0 + $0x38] sm:$0xff]
    %v35 = vld [vmem:[%s1] sm:$0xff]
    %v36 = vld [vmem:[%s1 + $0x8] sm:$0xff]
    %v37 = vld [vmem:[%s3] sm:$0x1]
    %v39 = vperm.slane %v37, 0
    %vm41 = vcmask 130048
    %v43 = vsel %vm41, %v27, 0
    %v46 = vsel %vm41, %v28, 0
    %v49 = vsel %vm41, %v29, 0
    %v52 = vsel %vm41, %v30, 0
    %v55 = vsel %vm41, %v31, 0
    %v58 = vsel %vm41, %v32, 0
    %v61 = vsel %vm41, %v33, 0
    %v64 = vsel %vm41, %v34, 0
    %66 = vmatpush.msra.mxu0 0.0
    %67 = vmatpush.msra.mxu0 0.0
    %68 = vmatpush.msra.mxu0 0.0
    %69 = vmatpush.msra.mxu0 0.0
    %70 = vmatpush.msra.mxu0 0.0
    %71 = vmatpush.msra.mxu0 0.0
    %72 = vmatpush.msra.mxu0 0.0
    %73 = vmatpush.msra.mxu0 0.0
    %74 = vmatpush.msra.mxu0 0.0
    %75 = vmatpush.msra.mxu0 0.0
    %76 = vmatpush.msra.mxu0 0.0
    %77 = vmatpush.msra.mxu0 0.0
    %78 = vmatpush.msra.mxu0 0.0
    %79 = vmatpush.msra.mxu0 0.0
    %80 = vmatpush.msra.mxu0 %v36
    %81 = vmatpush.msra.mxu0 %v35
    %82 = vmatmul.f32.gmra.mxu0 %v43
    %v83 = vpop.f32.mrf.mxu0
    %v84 = vadd.f32 %v39, %v83
    %85 = vmatmul.f32.gmra.mxu0 %v46
    %v86 = vpop.f32.mrf.mxu0
    %v87 = vadd.f32 %v39, %v86
    %88 = vmatmul.f32.gmra.mxu0 %v49
    %v89 = vpop.f32.mrf.mxu0
    %v90 = vadd.f32 %v39, %v89
    %91 = vmatmul.f32.gmra.mxu0 %v52
    %v92 = vpop.f32.mrf.mxu0
    %v93 = vadd.f32 %v39, %v92
    %94 = vmatmul.f32.gmra.mxu0 %v55
    %v95 = vpop.f32.mrf.mxu0
    %v96 = vadd.f32 %v39, %v95
    %97 = vmatmul.f32.gmra.mxu0 %v58
    %v98 = vpop.f32.mrf.mxu0
    %v99 = vadd.f32 %v39, %v98
    %100 = vmatmul.f32.gmra.mxu0 %v61
    %v101 = vpop.f32.mrf.mxu0
    %v102 = vadd.f32 %v39, %v101
    %103 = vmatmul.f32.gmra.mxu0 %v64
    %v104 = vpop.f32.mrf.mxu0
    %v105 = vadd.f32 %v39, %v104
    %106 = vdwg.mxu0
    %v107 = vld [vmem:[%s2] sm:$0xff]
    %v108 = vld [vmem:[%s2 + $0x8] sm:$0xff]
    %v109 = vld [vmem:[%s2 + $0x10] sm:$0xff]
    %v110 = vld [vmem:[%s2 + $0x18] sm:$0xff]
    %v111 = vld [vmem:[%s4] sm:$0x1]
    %v113 = vperm.slane %v111, 0
    %vm114 = vcmask 261120
    %v116 = vsel %vm114, 0.0, 0
    %118 = vmatpush.msra.mxu0 0.0
    %119 = vmatpush.msra.mxu0 0.0
    %120 = vmatpush.msra.mxu0 0.0
    %121 = vmatpush.msra.mxu0 0.0
    %122 = vmatpush.msra.mxu0 0.0
    %123 = vmatpush.msra.mxu0 0.0
    %124 = vmatpush.msra.mxu0 0.0
    %125 = vmatpush.msra.mxu0 0.0
    %126 = vmatpush.msra.mxu0 0.0
    %127 = vmatpush.msra.mxu0 0.0
    %128 = vmatpush.msra.mxu0 0.0
    %129 = vmatpush.msra.mxu0 0.0
    %130 = vmatpush.msra.mxu0 %v110
    %131 = vmatpush.msra.mxu0 %v109
    %132 = vmatpush.msra.mxu0 %v108
    %133 = vmatpush.msra.mxu0 %v107
    %134 = vmatmul.f32.gmra.mxu0 %v116
    %v135 = vpop.f32.mrf.mxu0
    %v136 = vadd.f32 0.0, %v135
    %137 = vdwg.mxu0
    %v138 = vadd.f32 %v84, %v136
    %v139 = vxor.u32 %v138, 2147483648
    %v140 = vmul.f32 %v139, 1.442695
    %v141 = vpow.pop %v140
    %v142 = vadd.f32 %v141, 1.0
    %v143 = vrcp.pop %v142
    %v144 = vmul.f32 %v142, %v143
    %v145 = vsub.f32 1.0, %v144
    %v146 = vmul.f32 %v143, %v145
    %v147 = vadd.f32 %v143, %v146
    %vm148 = vweird.f32 %v142
    %vm149 = vweird.f32 %v143
    %vm150 = vmor %vm148, %vm149
    %v151 = vsel %vm150, %v143, %v147
    %v152 = vand.u32 2147483647, %v142
    %vm153 = vcmp.eq.f32.partialorder %v152, 8.507059e+37
    %v154 = vand.u32 %v142, 2147483648
    %v155 = vor.u32 1.1754944e-38, %v154
    %v156 = vsel %vm153, %v155, %v151
    %v157 = vmul.f32 1.0, %v156
    %158 = vrot.lane.b32.xlu0 %v113, 64
    %v159 = vpop.permute.xlu0 %158
    %v161 = vadd.f32 %v136, %v159
    %163 = vrot.lane.b32.xlu0 %v161, 64
    %v164 = vpop.permute.xlu0 %163
    %v166 = vmul.f32 %v157, %v164
    %168 = vrot.lane.b32.xlu0 %v166, 64
    %v169 = vpop.permute.xlu0 %168
    %v171 = vadd.f32 %v84, %v169
    %v172 = vtanh.pop %v171
    %v173 = vsub.f32 1.0, %v157
    %175 = vrot.lane.b32.xlu0 %v172, 96
    %v176 = vpop.permute.xlu0 %175
    %v178 = vmul.f32 %v173, %v176
    %v179 = vmul.f32 %v157, 0.0
    %v180 = vadd.f32 %v178, %v179
    %182 = vrot.lane.b32.xlu0 %v180, 96
    %v183 = vpop.permute.xlu0 %182
    %v184 = vsel %vm114, %v183, 0
    %186 = vmatpush.msra.mxu0 0.0
    %187 = vmatpush.msra.mxu0 0.0
    %188 = vmatpush.msra.mxu0 0.0
    %189 = vmatpush.msra.mxu0 0.0
    %190 = vmatpush.msra.mxu0 0.0
    %191 = vmatpush.msra.mxu0 0.0
    %192 = vmatpush.msra.mxu0 0.0
    %193 = vmatpush.msra.mxu0 0.0
    %194 = vmatpush.msra.mxu0 0.0
    %195 = vmatpush.msra.mxu0 0.0
    %196 = vmatpush.msra.mxu0 0.0
    %197 = vmatpush.msra.mxu0 0.0
    %198 = vmatpush.msra.mxu0 %v110
    %199 = vmatpush.msra.mxu0 %v109
    %200 = vmatpush.msra.mxu0 %v108
    %201 = vmatpush.msra.mxu0 %v107
    %202 = vmatmul.f32.gmra.mxu0 %v184
    %v203 = vpop.f32.mrf.mxu0
    %v204 = vadd.f32 0.0, %v203
    %205 = vdwg.mxu0
    %v206 = vadd.f32 %v87, %v204
    %v207 = vxor.u32 %v206, 2147483648
    %v208 = vmul.f32 %v207, 1.442695
    %v209 = vpow.pop %v208
    %v210 = vadd.f32 %v209, 1.0
    %v211 = vrcp.pop %v210
    %v212 = vmul.f32 %v210, %v211
    %v213 = vsub.f32 1.0, %v212
    %v214 = vmul.f32 %v211, %v213
    %v215 = vadd.f32 %v211, %v214
    %vm216 = vweird.f32 %v210
    %vm217 = vweird.f32 %v211
    %vm218 = vmor %vm216, %vm217
    %v219 = vsel %vm218, %v211, %v215
    %v220 = vand.u32 2147483647, %v210
    %vm221 = vcmp.eq.f32.partialorder %v220, 8.507059e+37
    %v222 = vand.u32 %v210, 2147483648
    %v223 = vor.u32 1.1754944e-38, %v222
    %v224 = vsel %vm221, %v223, %v219
    %v225 = vmul.f32 1.0, %v224
    %v226 = vadd.f32 %v204, %v159
    %228 = vrot.lane.b32.xlu0 %v226, 64
    %v229 = vpop.permute.xlu0 %228
    %v231 = vmul.f32 %v225, %v229
    %233 = vrot.lane.b32.xlu0 %v231, 64
    %v234 = vpop.permute.xlu0 %233
    %v236 = vadd.f32 %v87, %v234
    %v237 = vtanh.pop %v236
    %v238 = vsub.f32 1.0, %v225
    %240 = vrot.lane.b32.xlu0 %v237, 96
    %v241 = vpop.permute.xlu0 %240
    %v243 = vmul.f32 %v238, %v241
    %v244 = vmul.f32 %v225, %v180
    %v245 = vadd.f32 %v243, %v244
    %247 = vrot.lane.b32.xlu0 %v245, 96
    %v248 = vpop.permute.xlu0 %247
    %v249 = vsel %vm114, %v248, 0
    %251 = vmatpush.msra.mxu0 0.0
    %252 = vmatpush.msra.mxu0 0.0
    %253 = vmatpush.msra.mxu0 0.0
    %254 = vmatpush.msra.mxu0 0.0
    %255 = vmatpush.msra.mxu0 0.0
    %256 = vmatpush.msra.mxu0 0.0
    %257 = vmatpush.msra.mxu0 0.0
    %258 = vmatpush.msra.mxu0 0.0
    %259 = vmatpush.msra.mxu0 0.0
    %260 = vmatpush.msra.mxu0 0.0
    %261 = vmatpush.msra.mxu0 0.0
    %262 = vmatpush.msra.mxu0 0.0
    %263 = vmatpush.msra.mxu0 %v110
    %264 = vmatpush.msra.mxu0 %v109
    %265 = vmatpush.msra.mxu0 %v108
    %266 = vmatpush.msra.mxu0 %v107
    %267 = vmatmul.f32.gmra.mxu0 %v249
    %v268 = vpop.f32.mrf.mxu0
    %v269 = vadd.f32 0.0, %v268
    %270 = vdwg.mxu0
    %v271 = vadd.f32 %v90, %v269
    %v272 = vxor.u32 %v271, 2147483648
    %v273 = vmul.f32 %v272, 1.442695
    %v274 = vpow.pop %v273
    %v275 = vadd.f32 %v274, 1.0
    %v276 = vrcp.pop %v275
    %v277 = vmul.f32 %v275, %v276
    %v278 = vsub.f32 1.0, %v277
    %v279 = vmul.f32 %v276, %v278
    %v280 = vadd.f32 %v276, %v279
    %vm281 = vweird.f32 %v275
    %vm282 = vweird.f32 %v276
    %vm283 = vmor %vm281, %vm282
    %v284 = vsel %vm283, %v276, %v280
    %v285 = vand.u32 2147483647, %v275
    %vm286 = vcmp.eq.f32.partialorder %v285, 8.507059e+37
    %v287 = vand.u32 %v275, 2147483648
    %v288 = vor.u32 1.1754944e-38, %v287
    %v289 = vsel %vm286, %v288, %v284
    %v290 = vmul.f32 1.0, %v289
    %v291 = vadd.f32 %v269, %v159
    %293 = vrot.lane.b32.xlu0 %v291, 64
    %v294 = vpop.permute.xlu0 %293
    %v296 = vmul.f32 %v290, %v294
    %298 = vrot.lane.b32.xlu0 %v296, 64
    %v299 = vpop.permute.xlu0 %298
    %v301 = vadd.f32 %v90, %v299
    %v302 = vtanh.pop %v301
    %v303 = vsub.f32 1.0, %v290
    %305 = vrot.lane.b32.xlu0 %v302, 96
    %v306 = vpop.permute.xlu0 %305
    %v308 = vmul.f32 %v303, %v306
    %v309 = vmul.f32 %v290, %v245
    %v310 = vadd.f32 %v308, %v309
    %312 = vrot.lane.b32.xlu0 %v310, 96
    %v313 = vpop.permute.xlu0 %312
    %v314 = vsel %vm114, %v313, 0
    %316 = vmatpush.msra.mxu0 0.0
    %317 = vmatpush.msra.mxu0 0.0
    %318 = vmatpush.msra.mxu0 0.0
    %319 = vmatpush.msra.mxu0 0.0
    %320 = vmatpush.msra.mxu0 0.0
    %321 = vmatpush.msra.mxu0 0.0
    %322 = vmatpush.msra.mxu0 0.0
    %323 = vmatpush.msra.mxu0 0.0
    %324 = vmatpush.msra.mxu0 0.0
    %325 = vmatpush.msra.mxu0 0.0
    %326 = vmatpush.msra.mxu0 0.0
    %327 = vmatpush.msra.mxu0 0.0
    %328 = vmatpush.msra.mxu0 %v110
    %329 = vmatpush.msra.mxu0 %v109
    %330 = vmatpush.msra.mxu0 %v108
    %331 = vmatpush.msra.mxu0 %v107
    %332 = vmatmul.f32.gmra.mxu0 %v314
    %v333 = vpop.f32.mrf.mxu0
    %v334 = vadd.f32 0.0, %v333
    %335 = vdwg.mxu0
    %v336 = vadd.f32 %v93, %v334
    %v337 = vxor.u32 %v336, 2147483648
    %v338 = vmul.f32 %v337, 1.442695
    %v339 = vpow.pop %v338
    %v340 = vadd.f32 %v339, 1.0
    %v341 = vrcp.pop %v340
    %v342 = vmul.f32 %v340, %v341
    %v343 = vsub.f32 1.0, %v342
    %v344 = vmul.f32 %v341, %v343
    %v345 = vadd.f32 %v341, %v344
    %vm346 = vweird.f32 %v340
    %vm347 = vweird.f32 %v341
    %vm348 = vmor %vm346, %vm347
    %v349 = vsel %vm348, %v341, %v345
    %v350 = vand.u32 2147483647, %v340
    %vm351 = vcmp.eq.f32.partialorder %v350, 8.507059e+37
    %v352 = vand.u32 %v340, 2147483648
    %v353 = vor.u32 1.1754944e-38, %v352
    %v354 = vsel %vm351, %v353, %v349
    %v355 = vmul.f32 1.0, %v354
    %v356 = vadd.f32 %v334, %v159
    %358 = vrot.lane.b32.xlu0 %v356, 64
    %v359 = vpop.permute.xlu0 %358
    %v361 = vmul.f32 %v355, %v359
    %363 = vrot.lane.b32.xlu0 %v361, 64
    %v364 = vpop.permute.xlu0 %363
    %v366 = vadd.f32 %v93, %v364
    %v367 = vtanh.pop %v366
    %v368 = vsub.f32 1.0, %v355
    %370 = vrot.lane.b32.xlu0 %v367, 96
    %v371 = vpop.permute.xlu0 %370
    %v373 = vmul.f32 %v368, %v371
    %v374 = vmul.f32 %v355, %v310
    %v375 = vadd.f32 %v373, %v374
    %377 = vrot.lane.b32.xlu0 %v375, 96
    %v378 = vpop.permute.xlu0 %377
    %v379 = vsel %vm114, %v378, 0
    %381 = vmatpush.msra.mxu0 0.0
    %382 = vmatpush.msra.mxu0 0.0
    %383 = vmatpush.msra.mxu0 0.0
    %384 = vmatpush.msra.mxu0 0.0
    %385 = vmatpush.msra.mxu0 0.0
    %386 = vmatpush.msra.mxu0 0.0
    %387 = vmatpush.msra.mxu0 0.0
    %388 = vmatpush.msra.mxu0 0.0
    %389 = vmatpush.msra.mxu0 0.0
    %390 = vmatpush.msra.mxu0 0.0
    %391 = vmatpush.msra.mxu0 0.0
    %392 = vmatpush.msra.mxu0 0.0
    %393 = vmatpush.msra.mxu0 %v110
    %394 = vmatpush.msra.mxu0 %v109
    %395 = vmatpush.msra.mxu0 %v108
    %396 = vmatpush.msra.mxu0 %v107
    %397 = vmatmul.f32.gmra.mxu0 %v379
    %v398 = vpop.f32.mrf.mxu0
    %v399 = vadd.f32 0.0, %v398
    %400 = vdwg.mxu0
    %v401 = vadd.f32 %v96, %v399
    %v402 = vxor.u32 %v401, 2147483648
    %v403 = vmul.f32 %v402, 1.442695
    %v404 = vpow.pop %v403
    %v405 = vadd.f32 %v404, 1.0
    %v406 = vrcp.pop %v405
    %v407 = vmul.f32 %v405, %v406
    %v408 = vsub.f32 1.0, %v407
    %v409 = vmul.f32 %v406, %v408
    %v410 = vadd.f32 %v406, %v409
    %vm411 = vweird.f32 %v405
    %vm412 = vweird.f32 %v406
    %vm413 = vmor %vm411, %vm412
    %v414 = vsel %vm413, %v406, %v410
    %v415 = vand.u32 2147483647, %v405
    %vm416 = vcmp.eq.f32.partialorder %v415, 8.507059e+37
    %v417 = vand.u32 %v405, 2147483648
    %v418 = vor.u32 1.1754944e-38, %v417
    %v419 = vsel %vm416, %v418, %v414
    %v420 = vmul.f32 1.0, %v419
    %v421 = vadd.f32 %v399, %v159
    %423 = vrot.lane.b32.xlu0 %v421, 64
    %v424 = vpop.permute.xlu0 %423
    %v426 = vmul.f32 %v420, %v424
    %428 = vrot.lane.b32.xlu0 %v426, 64
    %v429 = vpop.permute.xlu0 %428
    %v431 = vadd.f32 %v96, %v429
    %v432 = vtanh.pop %v431
    %v433 = vsub.f32 1.0, %v420
    %435 = vrot.lane.b32.xlu0 %v432, 96
    %v436 = vpop.permute.xlu0 %435
    %v438 = vmul.f32 %v433, %v436
    %v439 = vmul.f32 %v420, %v375
    %v440 = vadd.f32 %v438, %v439
    %442 = vrot.lane.b32.xlu0 %v440, 96
    %v443 = vpop.permute.xlu0 %442
    %v444 = vsel %vm114, %v443, 0
    %446 = vmatpush.msra.mxu0 0.0
    %447 = vmatpush.msra.mxu0 0.0
    %448 = vmatpush.msra.mxu0 0.0
    %449 = vmatpush.msra.mxu0 0.0
    %450 = vmatpush.msra.mxu0 0.0
    %451 = vmatpush.msra.mxu0 0.0
    %452 = vmatpush.msra.mxu0 0.0
    %453 = vmatpush.msra.mxu0 0.0
    %454 = vmatpush.msra.mxu0 0.0
    %455 = vmatpush.msra.mxu0 0.0
    %456 = vmatpush.msra.mxu0 0.0
    %457 = vmatpush.msra.mxu0 0.0
    %458 = vmatpush.msra.mxu0 %v110
    %459 = vmatpush.msra.mxu0 %v109
    %460 = vmatpush.msra.mxu0 %v108
    %461 = vmatpush.msra.mxu0 %v107
    %462 = vmatmul.f32.gmra.mxu0 %v444
    %v463 = vpop.f32.mrf.mxu0
    %v464 = vadd.f32 0.0, %v463
    %465 = vdwg.mxu0
    %v466 = vadd.f32 %v99, %v464
    %v467 = vxor.u32 %v466, 2147483648
    %v468 = vmul.f32 %v467, 1.442695
    %v469 = vpow.pop %v468
    %v470 = vadd.f32 %v469, 1.0
    %v471 = vrcp.pop %v470
    %v472 = vmul.f32 %v470, %v471
    %v473 = vsub.f32 1.0, %v472
    %v474 = vmul.f32 %v471, %v473
    %v475 = vadd.f32 %v471, %v474
    %vm476 = vweird.f32 %v470
    %vm477 = vweird.f32 %v471
    %vm478 = vmor %vm476, %vm477
    %v479 = vsel %vm478, %v471, %v475
    %v480 = vand.u32 2147483647, %v470
    %vm481 = vcmp.eq.f32.partialorder %v480, 8.507059e+37
    %v482 = vand.u32 %v470, 2147483648
    %v483 = vor.u32 1.1754944e-38, %v482
    %v484 = vsel %vm481, %v483, %v479
    %v485 = vmul.f32 1.0, %v484
    %v486 = vadd.f32 %v464, %v159
    %488 = vrot.lane.b32.xlu0 %v486, 64
    %v489 = vpop.permute.xlu0 %488
    %v491 = vmul.f32 %v485, %v489
    %493 = vrot.lane.b32.xlu0 %v491, 64
    %v494 = vpop.permute.xlu0 %493
    %v496 = vadd.f32 %v99, %v494
    %v497 = vtanh.pop %v496
    %v498 = vsub.f32 1.0, %v485
    %500 = vrot.lane.b32.xlu0 %v497, 96
    %v501 = vpop.permute.xlu0 %500
    %v503 = vmul.f32 %v498, %v501
    %v504 = vmul.f32 %v485, %v440
    %v505 = vadd.f32 %v503, %v504
    %507 = vrot.lane.b32.xlu0 %v505, 96
    %v508 = vpop.permute.xlu0 %507
    %v509 = vsel %vm114, %v508, 0
    %511 = vmatpush.msra.mxu0 0.0
    %512 = vmatpush.msra.mxu0 0.0
    %513 = vmatpush.msra.mxu0 0.0
    %514 = vmatpush.msra.mxu0 0.0
    %515 = vmatpush.msra.mxu0 0.0
    %516 = vmatpush.msra.mxu0 0.0
    %517 = vmatpush.msra.mxu0 0.0
    %518 = vmatpush.msra.mxu0 0.0
    %519 = vmatpush.msra.mxu0 0.0
    %520 = vmatpush.msra.mxu0 0.0
    %521 = vmatpush.msra.mxu0 0.0
    %522 = vmatpush.msra.mxu0 0.0
    %523 = vmatpush.msra.mxu0 %v110
    %524 = vmatpush.msra.mxu0 %v109
    %525 = vmatpush.msra.mxu0 %v108
    %526 = vmatpush.msra.mxu0 %v107
    %527 = vmatmul.f32.gmra.mxu0 %v509
    %v528 = vpop.f32.mrf.mxu0
    %v529 = vadd.f32 0.0, %v528
    %530 = vdwg.mxu0
    %v531 = vadd.f32 %v102, %v529
    %v532 = vxor.u32 %v531, 2147483648
    %v533 = vmul.f32 %v532, 1.442695
    %v534 = vpow.pop %v533
    %v535 = vadd.f32 %v534, 1.0
    %v536 = vrcp.pop %v535
    %v537 = vmul.f32 %v535, %v536
    %v538 = vsub.f32 1.0, %v537
    %v539 = vmul.f32 %v536, %v538
    %v540 = vadd.f32 %v536, %v539
    %vm541 = vweird.f32 %v535
    %vm542 = vweird.f32 %v536
    %vm543 = vmor %vm541, %vm542
    %v544 = vsel %vm543, %v536, %v540
    %v545 = vand.u32 2147483647, %v535
    %vm546 = vcmp.eq.f32.partialorder %v545, 8.507059e+37
    %v547 = vand.u32 %v535, 2147483648
    %v548 = vor.u32 1.1754944e-38, %v547
    %v549 = vsel %vm546, %v548, %v544
    %v550 = vmul.f32 1.0, %v549
    %v551 = vadd.f32 %v529, %v159
    %553 = vrot.lane.b32.xlu0 %v551, 64
    %v554 = vpop.permute.xlu0 %553
    %v556 = vmul.f32 %v550, %v554
    %558 = vrot.lane.b32.xlu0 %v556, 64
    %v559 = vpop.permute.xlu0 %558
    %v561 = vadd.f32 %v102, %v559
    %v562 = vtanh.pop %v561
    %v563 = vsub.f32 1.0, %v550
    %565 = vrot.lane.b32.xlu0 %v562, 96
    %v566 = vpop.permute.xlu0 %565
    %v568 = vmul.f32 %v563, %v566
    %v569 = vmul.f32 %v550, %v505
    %v570 = vadd.f32 %v568, %v569
    %572 = vrot.lane.b32.xlu0 %v570, 96
    %v573 = vpop.permute.xlu0 %572
    %v574 = vsel %vm114, %v573, 0
    %576 = vmatpush.msra.mxu0 0.0
    %577 = vmatpush.msra.mxu0 0.0
    %578 = vmatpush.msra.mxu0 0.0
    %579 = vmatpush.msra.mxu0 0.0
    %580 = vmatpush.msra.mxu0 0.0
    %581 = vmatpush.msra.mxu0 0.0
    %582 = vmatpush.msra.mxu0 0.0
    %583 = vmatpush.msra.mxu0 0.0
    %584 = vmatpush.msra.mxu0 0.0
    %585 = vmatpush.msra.mxu0 0.0
    %586 = vmatpush.msra.mxu0 0.0
    %587 = vmatpush.msra.mxu0 0.0
    %588 = vmatpush.msra.mxu0 %v110
    %589 = vmatpush.msra.mxu0 %v109
    %590 = vmatpush.msra.mxu0 %v108
    %591 = vmatpush.msra.mxu0 %v107
    %592 = vmatmul.f32.gmra.mxu0 %v574
    %v593 = vpop.f32.mrf.mxu0
    %v594 = vadd.f32 0.0, %v593
    %595 = vdwg.mxu0
    %v596 = vadd.f32 %v105, %v594
    %v597 = vxor.u32 %v596, 2147483648
    %v598 = vmul.f32 %v597, 1.442695
    %v599 = vpow.pop %v598
    %v600 = vadd.f32 %v599, 1.0
    %v601 = vrcp.pop %v600
    %v602 = vmul.f32 %v600, %v601
    %v603 = vsub.f32 1.0, %v602
    %v604 = vmul.f32 %v601, %v603
    %v605 = vadd.f32 %v601, %v604
    %vm606 = vweird.f32 %v600
    %vm607 = vweird.f32 %v601
    %vm608 = vmor %vm606, %vm607
    %v609 = vsel %vm608, %v601, %v605
    %v610 = vand.u32 2147483647, %v600
    %vm611 = vcmp.eq.f32.partialorder %v610, 8.507059e+37
    %v612 = vand.u32 %v600, 2147483648
    %v613 = vor.u32 1.1754944e-38, %v612
    %v614 = vsel %vm611, %v613, %v609
    %v615 = vmul.f32 1.0, %v614
    %v616 = vadd.f32 %v594, %v159
    %618 = vrot.lane.b32.xlu0 %v616, 64
    %v619 = vpop.permute.xlu0 %618
    %v621 = vmul.f32 %v615, %v619
    %623 = vrot.lane.b32.xlu0 %v621, 64
    %v624 = vpop.permute.xlu0 %623
    %v626 = vadd.f32 %v105, %v624
    %v627 = vtanh.pop %v626
    %v628 = vsub.f32 1.0, %v615
    %630 = vrot.lane.b32.xlu0 %v627, 96
    %v631 = vpop.permute.xlu0 %630
    %v633 = vmul.f32 %v628, %v631
    %v634 = vmul.f32 %v615, %v570
    %v635 = vadd.f32 %v633, %v634
    %v636 = vld [vmem:[%s5] sm:$0xff]
    %v637 = vld [vmem:[%s5 + $0x8] sm:$0xff]
    %v638 = vld [vmem:[%s5 + $0x10] sm:$0xff]
    %v639 = vld [vmem:[%s5 + $0x18] sm:$0xff]
    %v640 = vld [vmem:[%s6] sm:$0x1]
    %v642 = vperm.slane %v640, 0
    %645 = vrot.lane.b32.xlu0 %v635, 96
    %v646 = vpop.permute.xlu0 %645
    %v647 = vsel %vm114, %v646, 0
    %649 = vmatpush.msra.mxu0 0.0
    %650 = vmatpush.msra.mxu0 0.0
    %651 = vmatpush.msra.mxu0 0.0
    %652 = vmatpush.msra.mxu0 0.0
    %653 = vmatpush.msra.mxu0 0.0
    %654 = vmatpush.msra.mxu0 0.0
    %655 = vmatpush.msra.mxu0 0.0
    %656 = vmatpush.msra.mxu0 0.0
    %657 = vmatpush.msra.mxu0 0.0
    %658 = vmatpush.msra.mxu0 0.0
    %659 = vmatpush.msra.mxu0 0.0
    %660 = vmatpush.msra.mxu0 0.0
    %661 = vmatpush.msra.mxu0 %v639
    %662 = vmatpush.msra.mxu0 %v638
    %663 = vmatpush.msra.mxu0 %v637
    %664 = vmatpush.msra.mxu0 %v636
    %665 = vmatmul.f32.gmra.mxu0 %v647
    %v666 = vpop.f32.mrf.mxu0
    %v667 = vadd.f32 %v642, %v666
    %668 = vdwg.mxu0
    %v669 = vmul.f32 %v667, %v667
    %vm670 = vcmask 64512
    %v671 = vsel %vm670, %v669, 0.0
    %672 = vadd.xlane.f32.xlu0 %v671
    %v673 = vpop.xlane.xlu0 %672
    %v674 = vmax.f32 %v673, 1e-24
    %v675 = vrsqrt.pop %v674
    %v676 = vmul.f32 %v675, %v674
    %v677 = vmul.f32 %v676, %v675
    %v678 = vmul.f32 0.5, %v677
    %v679 = vsub.f32 1.5, %v678
    %v680 = vmul.f32 %v675, %v679
    %vm681 = vweird.f32 %v674
    %vm682 = vweird.f32 %v675
    %vm683 = vmor %vm681, %vm682
    %v684 = vsel %vm683, %v675, %v680
    %v685 = vmul.f32 %v667, %v684
    %686 = vst.msk [vmem:[#allocation2] sm:$0xff] %vm670, %v685
    // Predicated region
    $region30: #{tpu_custom_call.1} parent=1 // pred_check
      _
    $region31: #{tpu_custom_call.1} parent=1 // pred_check_branch
      %688 = sbr.rel (0) target = $region33
    $region32: #{tpu_custom_call.1} parent=1 // pred_region
      %690 = vsyncadd [#allocation3], 0
      %s692 = sshll.u32 [#allocation2], 4
      %s693 = int_to_ptr.vmem [resolvable:$true] %s692
      %s694 = sshll.u32 %s7, 4
      %s695 = int_to_ptr.hbm [resolvable:$true] %s694
      %697 = dma.vmem_to_hbm [thread:$0]  %s693, 128, %s695, [#allocation3]
    $region33: #{tpu_custom_call.1} parent=1 // pred_fallthru
      _
    // Predicated region
    $region34: #{tpu_custom_call.1} parent=1 // pred_check
      _
    $region35: #{tpu_custom_call.1} parent=1 // pred_check_branch
      %699 = sbr.rel (0) target = $region37
    $region36: #{tpu_custom_call.1} parent=1 // pred_region
      %701 = dma.done [#allocation3], 128
    $region37: #{tpu_custom_call.1} parent=1 // pred_fallthru
      _
    %702 = vsyncpa [#allocation3], 1

</llo_original>
